<compile_context>
chip_gen: v7x
topology: tpu7x:2x2x1
jax: 0.10.0
libtpu: 0.0.40
codegen_flags: <defaults>
</compile_context>

<pallas_src>
import functools

import jax
import jax.numpy as jnp
from jax.experimental import pallas as pl
from jax.experimental.pallas import tpu as pltpu

LANE = 128


def actor_kernel(x_ref, w1_ref, b1_ref, w2_ref, b2_ref, w3_ref, b3_ref,
                 mean_ref):
    # Layer 1: Linear + ReLU  (bf16 operands, f32 accumulation)
    h1 = jnp.dot(x_ref[...].astype(jnp.bfloat16), w1_ref[...],
                 preferred_element_type=jnp.float32)
    h1 = jnp.maximum(h1 + b1_ref[...], 0.0)
    # Layer 2: Linear + ReLU
    h2 = jnp.dot(h1.astype(jnp.bfloat16), w2_ref[...],
                 preferred_element_type=jnp.float32)
    h2 = jnp.maximum(h2 + b2_ref[...], 0.0)
    # Output head: Linear + Tanh (lane-padded to 128 outputs)
    out = jnp.dot(h2.astype(jnp.bfloat16), w3_ref[...],
                  preferred_element_type=jnp.float32)
    mean_ref[...] = jnp.tanh(out + b3_ref[...])


def _round_up(x, m):
    return ((x + m - 1) // m) * m


@functools.partial(jax.jit, static_argnames=("tile_b",))
def actor_forward(state, params, tile_b=256):
    """state: [B, obs] float32. Returns (mean [B, A] f32, std [A] f32)."""
    w1, b1, w2, b2, w3, b3, log_std = params
    B, OBS = state.shape
    H1 = w1.shape[1]
    H2 = w2.shape[1]
    A = w3.shape[1]

    # --- batch tiling (sublane axis must be a multiple of 8) ---
    tb = min(tile_b, max(8, _round_up(B, 8)))
    B_pad = _round_up(B, tb)
    if B_pad != B:
        state = jnp.pad(state, ((0, B_pad - B), (0, 0)))

    # --- lane-dense output head: pad A up to a multiple of 128 ---
    A_pad = max(LANE, _round_up(A, LANE))
    w3p = jnp.pad(w3, ((0, 0), (0, A_pad - A)))
    b3p = jnp.pad(b3, ((0, 0), (0, A_pad - A)))

    # --- bf16 matmul operands (weights), f32 biases ---
    w1b = w1.astype(jnp.bfloat16)
    w2b = w2.astype(jnp.bfloat16)
    w3b = w3p.astype(jnp.bfloat16)

    grid = (B_pad // tb,)

    flops = 2 * B_pad * (OBS * H1 + H1 * H2 + H2 * A_pad)
    transcendentals = B_pad * A_pad  # tanh
    bytes_accessed = (
        4 * (B_pad * OBS + B_pad * A_pad)           # f32 state in, mean out
        + 2 * (OBS * H1 + H1 * H2 + H2 * A_pad)      # bf16 weights
        + 4 * (H1 + H2 + A_pad)                      # f32 biases
    )

    mean_padded = pl.pallas_call(
        actor_kernel,
        out_shape=jax.ShapeDtypeStruct((B_pad, A_pad), jnp.float32),
        grid_spec=pltpu.PrefetchScalarGridSpec(
            num_scalar_prefetch=0,
            grid=grid,
            in_specs=[
                pl.BlockSpec((tb, OBS), lambda i: (i, 0)),    # state tile
                pl.BlockSpec((OBS, H1), lambda i: (0, 0)),    # w1 (resident)
                pl.BlockSpec((1, H1), lambda i: (0, 0)),      # b1
                pl.BlockSpec((H1, H2), lambda i: (0, 0)),     # w2
                pl.BlockSpec((1, H2), lambda i: (0, 0)),      # b2
                pl.BlockSpec((H2, A_pad), lambda i: (0, 0)),  # w3 (padded)
                pl.BlockSpec((1, A_pad), lambda i: (0, 0)),   # b3 (padded)
            ],
            out_specs=pl.BlockSpec((tb, A_pad), lambda i: (i, 0)),
        ),
        compiler_params=pltpu.CompilerParams(
            dimension_semantics=("parallel",)),
        cost_estimate=pl.CostEstimate(
            flops=flops,
            transcendentals=transcendentals,
            bytes_accessed=bytes_accessed),
    )(state, w1b, b1, w2b, b2, w3b, b3p)

    mean = mean_padded[:B, :A]
    # std = exp(log_std): state-independent, computed outside the kernel.
    std = jnp.exp(log_std.reshape(-1))
    return mean, std


def init_params(key, observation_size, num_actions, hidden_size=(256, 256)):
    """Deterministic init mimicking nn.Linear's uniform(-1/sqrt(in), 1/sqrt(in))."""
    dims = [observation_size, hidden_size[0], hidden_size[1], num_actions]
    params = []
    keys = jax.random.split(key, 6)
    for i in range(3):
        fan_in = dims[i]
        bound = 1.0 / jnp.sqrt(fan_in)
        w = jax.random.uniform(keys[2 * i], (dims[i], dims[i + 1]),
                               minval=-bound, maxval=bound, dtype=jnp.float32)
        b = jax.random.uniform(keys[2 * i + 1], (1, dims[i + 1]),
                               minval=-bound, maxval=bound, dtype=jnp.float32)
        params.extend([w, b])
    log_std = jnp.zeros((1, num_actions), dtype=jnp.float32)  # nn.Parameter(zeros)
    params.append(log_std)
    return tuple(params)


if __name__ == "__main__":
    key = jax.random.PRNGKey(0)
    B, OBS, ACT = 8, 16, 8          # small shapes; hidden defaults to [256, 256]
    k_x, k_p = jax.random.split(key)
    state = jax.random.normal(k_x, (B, OBS), dtype=jnp.float32)
    params = init_params(k_p, OBS, ACT)

    mean, std = actor_forward(state, params)
    jax.block_until_ready((mean, std))

    # Sanity check against plain-JAX f32 reference (bf16 matmul operands in
    # the kernel => loosened tolerance for the mean).
    w1, b1, w2, b2, w3, b3, log_std = params
    h = jnp.maximum(state @ w1 + b1, 0.0)
    h = jnp.maximum(h @ w2 + b2, 0.0)
    ref_mean = jnp.tanh(h @ w3 + b3)
    ref_std = jnp.exp(log_std)[0]
    assert mean.shape == (B, ACT) and std.shape == (ACT,)
    assert jnp.allclose(mean, ref_mean, atol=2e-2), float(jnp.max(jnp.abs(mean - ref_mean)))
    assert jnp.allclose(std, ref_std, atol=1e-6)
    print("KERNEL_OK")
</pallas_src>

<mosaic_0001>
module attributes {stable_mosaic.version = 11 : i64} {
  func.func @actor_kernel(%arg0: i32, %arg1: memref<8x16xf32, #tpu.memory_space<vmem>>, %arg2: memref<16x256xbf16, #tpu.memory_space<vmem>>, %arg3: memref<1x256xf32, #tpu.memory_space<vmem>>, %arg4: memref<256x256xbf16, #tpu.memory_space<vmem>>, %arg5: memref<1x256xf32, #tpu.memory_space<vmem>>, %arg6: memref<256x128xbf16, #tpu.memory_space<vmem>>, %arg7: memref<1x128xf32, #tpu.memory_space<vmem>>, %arg8: memref<8x128xf32, #tpu.memory_space<vmem>>) attributes {dimension_semantics = [#tpu.dimension_semantics<parallel>], iteration_bounds = array<i64: 1>, scalar_prefetch = 0 : i64, scratch_operands = 0 : i64, tpu.core_type = #tpu.core_type<tc>, window_params = [{transform_indices = @transform_0, window_bounds = array<i64: 8, 16>}, {pipeline_mode = #tpu.pipeline_mode<synchronous>, transform_indices = @transform_1, window_bounds = array<i64: 16, 256>}, {pipeline_mode = #tpu.pipeline_mode<synchronous>, transform_indices = @transform_2, window_bounds = array<i64: 1, 256>}, {pipeline_mode = #tpu.pipeline_mode<synchronous>, transform_indices = @transform_3, window_bounds = array<i64: 256, 256>}, {pipeline_mode = #tpu.pipeline_mode<synchronous>, transform_indices = @transform_4, window_bounds = array<i64: 1, 256>}, {pipeline_mode = #tpu.pipeline_mode<synchronous>, transform_indices = @transform_5, window_bounds = array<i64: 256, 128>}, {pipeline_mode = #tpu.pipeline_mode<synchronous>, transform_indices = @transform_6, window_bounds = array<i64: 1, 128>}, {transform_indices = @transform_7, window_bounds = array<i64: 8, 128>}]} {
    %c0 = arith.constant 0 : index
    %c0_0 = arith.constant 0 : index
    %0 = vector.load %arg1[%c0, %c0_0] : memref<8x16xf32, #tpu.memory_space<vmem>>, vector<8x16xf32>
    %1 = arith.truncf %0 : vector<8x16xf32> to vector<8x16xbf16>
    %c0_1 = arith.constant 0 : index
    %c0_2 = arith.constant 0 : index
    %2 = vector.load %arg2[%c0_1, %c0_2] : memref<16x256xbf16, #tpu.memory_space<vmem>>, vector<16x256xbf16>
    %cst = arith.constant dense<0.000000e+00> : vector<8x256xf32>
    %3 = tpu.matmul %1, %2, %cst {dimension_numbers = #tpu.dot_dimension_numbers<[1], [0], [0], [1], [0, 0, 1, 1], [], []>} : vector<8x16xbf16>, vector<16x256xbf16>, vector<8x256xf32> -> vector<8x256xf32>
    %c0_3 = arith.constant 0 : index
    %c0_4 = arith.constant 0 : index
    %4 = vector.load %arg3[%c0_3, %c0_4] : memref<1x256xf32, #tpu.memory_space<vmem>>, vector<1x256xf32>
    %5 = vector.broadcast %4 : vector<1x256xf32> to vector<8x256xf32>
    %6 = arith.addf %3, %5 : vector<8x256xf32>
    %cst_5 = arith.constant 0.000000e+00 : f32
    %7 = vector.broadcast %cst_5 : f32 to vector<8x256xf32>
    %8 = arith.maximumf %6, %7 : vector<8x256xf32>
    %9 = arith.truncf %8 : vector<8x256xf32> to vector<8x256xbf16>
    %c0_6 = arith.constant 0 : index
    %c0_7 = arith.constant 0 : index
    %10 = vector.load %arg4[%c0_6, %c0_7] : memref<256x256xbf16, #tpu.memory_space<vmem>>, vector<256x256xbf16>
    %cst_8 = arith.constant dense<0.000000e+00> : vector<8x256xf32>
    %11 = tpu.matmul %9, %10, %cst_8 {dimension_numbers = #tpu.dot_dimension_numbers<[1], [0], [0], [1], [0, 0, 1, 1], [], []>} : vector<8x256xbf16>, vector<256x256xbf16>, vector<8x256xf32> -> vector<8x256xf32>
    %c0_9 = arith.constant 0 : index
    %c0_10 = arith.constant 0 : index
    %12 = vector.load %arg5[%c0_9, %c0_10] : memref<1x256xf32, #tpu.memory_space<vmem>>, vector<1x256xf32>
    %13 = vector.broadcast %12 : vector<1x256xf32> to vector<8x256xf32>
    %14 = arith.addf %11, %13 : vector<8x256xf32>
    %cst_11 = arith.constant 0.000000e+00 : f32
    %15 = vector.broadcast %cst_11 : f32 to vector<8x256xf32>
    %16 = arith.maximumf %14, %15 : vector<8x256xf32>
    %17 = arith.truncf %16 : vector<8x256xf32> to vector<8x256xbf16>
    %c0_12 = arith.constant 0 : index
    %c0_13 = arith.constant 0 : index
    %18 = vector.load %arg6[%c0_12, %c0_13] : memref<256x128xbf16, #tpu.memory_space<vmem>>, vector<256x128xbf16>
    %cst_14 = arith.constant dense<0.000000e+00> : vector<8x128xf32>
    %19 = tpu.matmul %17, %18, %cst_14 {dimension_numbers = #tpu.dot_dimension_numbers<[1], [0], [0], [1], [0, 0, 1, 1], [], []>} : vector<8x256xbf16>, vector<256x128xbf16>, vector<8x128xf32> -> vector<8x128xf32>
    %c0_15 = arith.constant 0 : index
    %c0_16 = arith.constant 0 : index
    %20 = vector.load %arg7[%c0_15, %c0_16] : memref<1x128xf32, #tpu.memory_space<vmem>>, vector<1x128xf32>
    %21 = vector.broadcast %20 : vector<1x128xf32> to vector<8x128xf32>
    %22 = arith.addf %19, %21 : vector<8x128xf32>
    %23 = math.tanh %22 : vector<8x128xf32>
    %c0_17 = arith.constant 0 : index
    %c0_18 = arith.constant 0 : index
    %24 = vector.load %arg8[%c0_17, %c0_18] : memref<8x128xf32, #tpu.memory_space<vmem>>, vector<8x128xf32>
    tpu.vector_store %arg8[%c0_17, %c0_18], %23 {strides = array<i32>} : memref<8x128xf32, #tpu.memory_space<vmem>>, vector<8x128xf32>,
    return
  }
  func.func @transform_0(%arg0: i32) -> (i32, i32) {
    %c0_i32 = arith.constant 0 : i32
    %c0_i32_0 = arith.constant 0 : i32
    return %arg0, %c0_i32 : i32, i32
  }
  func.func @transform_1(%arg0: i32) -> (i32, i32) {
    %c0_i32 = arith.constant 0 : i32
    %c0_i32_0 = arith.constant 0 : i32
    %c0_i32_1 = arith.constant 0 : i32
    return %c0_i32, %c0_i32_0 : i32, i32
  }
  func.func @transform_2(%arg0: i32) -> (i32, i32) {
    %c0_i32 = arith.constant 0 : i32
    %c0_i32_0 = arith.constant 0 : i32
    %c0_i32_1 = arith.constant 0 : i32
    return %c0_i32, %c0_i32_0 : i32, i32
  }
  func.func @transform_3(%arg0: i32) -> (i32, i32) {
    %c0_i32 = arith.constant 0 : i32
    %c0_i32_0 = arith.constant 0 : i32
    %c0_i32_1 = arith.constant 0 : i32
    return %c0_i32, %c0_i32_0 : i32, i32
  }
  func.func @transform_4(%arg0: i32) -> (i32, i32) {
    %c0_i32 = arith.constant 0 : i32
    %c0_i32_0 = arith.constant 0 : i32
    %c0_i32_1 = arith.constant 0 : i32
    return %c0_i32, %c0_i32_0 : i32, i32
  }
  func.func @transform_5(%arg0: i32) -> (i32, i32) {
    %c0_i32 = arith.constant 0 : i32
    %c0_i32_0 = arith.constant 0 : i32
    %c0_i32_1 = arith.constant 0 : i32
    return %c0_i32, %c0_i32_0 : i32, i32
  }
  func.func @transform_6(%arg0: i32) -> (i32, i32) {
    %c0_i32 = arith.constant 0 : i32
    %c0_i32_0 = arith.constant 0 : i32
    %c0_i32_1 = arith.constant 0 : i32
    return %c0_i32, %c0_i32_0 : i32, i32
  }
  func.func @transform_7(%arg0: i32) -> (i32, i32) {
    %c0_i32 = arith.constant 0 : i32
    %c0_i32_0 = arith.constant 0 : i32
    return %arg0, %c0_i32 : i32, i32
  }
}

</mosaic_0001>

<llo_original>
// kernel: actor_forward.1
$region0: #{actor_forward.1}
  #allocation0 [shape = 'u32[]', space=smem, size = 0x4, offset = 0x4, fixed_abs, tag = 'smem constant byte address 0x4 - core index']
  #allocation1 [shape = 'u32[144,128]{1,0:T(1,128)}', space=vmem, size = 0x12000, scoped, tag = 'internal scratch']
  %s0 = inlined_call_operand.vmem [shape: f32[8,16], index: 0, kind: input, shape index: {}]
  %s1 = inlined_call_operand.vmem [shape: bf16[16,256], index: 1, kind: input, shape index: {}]
  %s2 = inlined_call_operand.vmem [shape: f32[1,256], index: 2, kind: input, shape index: {}]
  %s3 = inlined_call_operand.vmem [shape: bf16[256,256], index: 3, kind: input, shape index: {}]
  %s4 = inlined_call_operand.vmem [shape: f32[1,256], index: 4, kind: input, shape index: {}]
  %s5 = inlined_call_operand.vmem [shape: bf16[256,128], index: 5, kind: input, shape index: {}]
  %s6 = inlined_call_operand.vmem [shape: f32[1,128], index: 6, kind: input, shape index: {}]
  %s7 = inlined_call_operand.hbm [shape: f32[8,128], index: 7, kind: output, shape index: {}]
  %s8 = sld [smem:[#allocation0]]
  $region38: #{actor_forward.1} parent=0
    _
  %s10 = ssub.s32 1, %s8
  %s11 = scalar_select 0, %s10, %s8
  $region1: #{actor_forward.1} parent=0
    #allocation2 [shape = 'u8[4096]{0}', space=vmem, size = 0x1000, scoped, tag = 'output window, operand 0, single buffered']
    #allocation3 [shape = 's32[1]{0}', space=sflag, size = 0x4, scoped, tag = 'scoped memory for actor_forward.1']
    %12 = vsyncpa [#allocation3], 0
    // Predicated region
    $region2: #{actor_forward.1} parent=1 // pred_check
      _
    $region3: #{actor_forward.1} parent=1 // pred_check_branch
      %14 = sbr.rel (0) target = $region5
    $region4: #{actor_forward.1} parent=1 // pred_region
      _
    $region5: #{actor_forward.1} parent=1 // pred_fallthru
      _
    // Predicated region
    $region6: #{actor_forward.1} parent=1 // pred_check
      _
    $region7: #{actor_forward.1} parent=1 // pred_check_branch
      %16 = sbr.rel (0) target = $region9
    $region8: #{actor_forward.1} parent=1 // pred_region
      _
    $region9: #{actor_forward.1} parent=1 // pred_fallthru
      _
    // Predicated region
    $region10: #{actor_forward.1} parent=1 // pred_check
      _
    $region11: #{actor_forward.1} parent=1 // pred_check_branch
      %18 = sbr.rel (0) target = $region13
    $region12: #{actor_forward.1} parent=1 // pred_region
      _
    $region13: #{actor_forward.1} parent=1 // pred_fallthru
      _
    // Predicated region
    $region14: #{actor_forward.1} parent=1 // pred_check
      _
    $region15: #{actor_forward.1} parent=1 // pred_check_branch
      %20 = sbr.rel (0) target = $region17
    $region16: #{actor_forward.1} parent=1 // pred_region
      _
    $region17: #{actor_forward.1} parent=1 // pred_fallthru
      _
    // Predicated region
    $region18: #{actor_forward.1} parent=1 // pred_check
      _
    $region19: #{actor_forward.1} parent=1 // pred_check_branch
      %22 = sbr.rel (0) target = $region21
    $region20: #{actor_forward.1} parent=1 // pred_region
      _
    $region21: #{actor_forward.1} parent=1 // pred_fallthru
      _
    // Predicated region
    $region22: #{actor_forward.1} parent=1 // pred_check
      _
    $region23: #{actor_forward.1} parent=1 // pred_check_branch
      %24 = sbr.rel (0) target = $region25
    $region24: #{actor_forward.1} parent=1 // pred_region
      _
    $region25: #{actor_forward.1} parent=1 // pred_fallthru
      _
    // Predicated region
    $region26: #{actor_forward.1} parent=1 // pred_check
      _
    $region27: #{actor_forward.1} parent=1 // pred_check_branch
      %26 = sbr.rel (0) target = $region29
    $region28: #{actor_forward.1} parent=1 // pred_region
      _
    $region29: #{actor_forward.1} parent=1 // pred_fallthru
      _
    %v28 = vld [vmem:[%s0] sm:$0xff]
    %v29 = vpack.c.bf16 %v28, %v28
    %v30 = vld [vmem:[%s1] sm:$0xff]
    %v31 = vld [vmem:[%s1 + $0x8] sm:$0xff]
    %v32 = vld [vmem:[%s2] sm:$0x3]
    %v34 = vlaneseq
    %v35 = vshrl.u32 %v34, 7
    %v36 = vsub.s32 0, %v35
    %v37 = vrot.slane %v32, %v36
    %v38 = vlaneseq
    %v39 = vshrl.u32 %v38, 7
    %v40 = vsub.s32 1, %v39
    %v41 = vrot.slane %v32, %v40
    %v46 = vunpack.c.l.b16 %v30
    %v47 = vunpack.c.h.b16 %v30
    %v48 = vunpack.c.l.b16 %v31
    %v49 = vunpack.c.h.b16 %v31
    %v50 = vpack.c.b16 %v48, %v46
    %v51 = vpack.c.b16 %v49, %v47
    %vm54 = vcmask 130048
    %v56 = vsel %vm54, %v29, 0
    %58 = vmatprep.subr.bf16.mxu0 %v51
    %59 = vmatpush1.bf16.msra.mxu0 %v50
    %60 = vmatprep.subr.bf16.mxu0 0
    %61 = vmatpush1.bf16.msra.mxu0 0
    %62 = vmatprep.subr.bf16.mxu0 0
    %63 = vmatpush1.bf16.msra.mxu0 0
    %64 = vmatprep.subr.bf16.mxu0 0
    %65 = vmatpush1.bf16.msra.mxu0 0
    %66 = vmatprep.subr.bf16.mxu0 0
    %67 = vmatpush1.bf16.msra.mxu0 0
    %68 = vmatprep.subr.bf16.mxu0 0
    %69 = vmatpush1.bf16.msra.mxu0 0
    %70 = vmatprep.subr.bf16.mxu0 0
    %71 = vmatpush1.bf16.msra.mxu0 0
    %72 = vmatprep.subr.bf16.mxu0 0
    %73 = vmatpush1.bf16.msra.mxu0 0
    %74 = vmatprep.subr.bf16.mxu0 0
    %75 = vmatpush1.bf16.msra.mxu0 0
    %76 = vmatprep.subr.bf16.mxu0 0
    %77 = vmatpush1.bf16.msra.mxu0 0
    %78 = vmatprep.subr.bf16.mxu0 0
    %79 = vmatpush1.bf16.msra.mxu0 0
    %80 = vmatprep.subr.bf16.mxu0 0
    %81 = vmatpush1.bf16.msra.mxu0 0
    %82 = vmatprep.subr.bf16.mxu0 0
    %83 = vmatpush1.bf16.msra.mxu0 0
    %84 = vmatprep.subr.bf16.mxu0 0
    %85 = vmatpush1.bf16.msra.mxu0 0
    %86 = vmatprep.subr.bf16.mxu0 0
    %87 = vmatpush1.bf16.msra.mxu0 0
    %88 = vmatprep.subr.bf16.mxu0 0
    %89 = vmatpush1.bf16.msra.mxu0 0
    %90 = vmatprep.mubr.bf16.mxu0 0
    %91 = vmatmul.mubr.bf16.gmra.mrb[0].mxu0 %v56
    %v92 = vpop.f32.mrb[0].mxu0
    %v93 = vadd.f32 %v37, %v92
    %v94 = vpop.f32.mrb[0].mxu0
    %v95 = vadd.f32 %v41, %v94
    %v96 = vpop.f32.mrb[0].mxu0
    %v97 = vpop.f32.mrb[0].mxu0
    %98 = vdwg.mxu0
    %v99 = vmax.f32 %v93, 0.0
    %v100 = vmax.f32 %v95, 0.0
    %v101 = vpack.c.bf16 %v99, %v99
    %v102 = vpack.c.bf16 %v100, %v100
    %v103 = vld [vmem:[%s3] sm:$0xff]
    %v104 = vld [vmem:[%s3 + $0x8] sm:$0xff]
    %v105 = vld [vmem:[%s3 + $0x10] sm:$0xff]
    %v106 = vld [vmem:[%s3 + $0x18] sm:$0xff]
    %v107 = vld [vmem:[%s3 + $0x20] sm:$0xff]
    %v108 = vld [vmem:[%s3 + $0x28] sm:$0xff]
    %v109 = vld [vmem:[%s3 + $0x30] sm:$0xff]
    %v110 = vld [vmem:[%s3 + $0x38] sm:$0xff]
    %v111 = vld [vmem:[%s3 + $0x40] sm:$0xff]
    %v112 = vld [vmem:[%s3 + $0x48] sm:$0xff]
    %v113 = vld [vmem:[%s3 + $0x50] sm:$0xff]
    %v114 = vld [vmem:[%s3 + $0x58] sm:$0xff]
    %v115 = vld [vmem:[%s3 + $0x60] sm:$0xff]
    %v116 = vld [vmem:[%s3 + $0x68] sm:$0xff]
    %v117 = vld [vmem:[%s3 + $0x70] sm:$0xff]
    %v118 = vld [vmem:[%s3 + $0x78] sm:$0xff]
    %v119 = vld [vmem:[%s3 + $0x80] sm:$0xff]
    %v120 = vld [vmem:[%s3 + $0x88] sm:$0xff]
    %v121 = vld [vmem:[%s3 + $0x90] sm:$0xff]
    %v122 = vld [vmem:[%s3 + $0x98] sm:$0xff]
    %v123 = vld [vmem:[%s3 + $0xa0] sm:$0xff]
    %v124 = vld [vmem:[%s3 + $0xa8] sm:$0xff]
    %v125 = vld [vmem:[%s3 + $0xb0] sm:$0xff]
    %v126 = vld [vmem:[%s3 + $0xb8] sm:$0xff]
    %v127 = vld [vmem:[%s3 + $0xc0] sm:$0xff]
    %v128 = vld [vmem:[%s3 + $0xc8] sm:$0xff]
    %v129 = vld [vmem:[%s3 + $0xd0] sm:$0xff]
    %v130 = vld [vmem:[%s3 + $0xd8] sm:$0xff]
    %v131 = vld [vmem:[%s3 + $0xe0] sm:$0xff]
    %v132 = vld [vmem:[%s3 + $0xe8] sm:$0xff]
    %v133 = vld [vmem:[%s3 + $0xf0] sm:$0xff]
    %v134 = vld [vmem:[%s3 + $0xf8] sm:$0xff]
    %v135 = vld [vmem:[%s4] sm:$0x3]
    %v137 = vlaneseq
    %v138 = vshrl.u32 %v137, 7
    %v139 = vsub.s32 0, %v138
    %v140 = vrot.slane %v135, %v139
    %v141 = vlaneseq
    %v142 = vshrl.u32 %v141, 7
    %v143 = vsub.s32 1, %v142
    %v144 = vrot.slane %v135, %v143
    %v179 = vunpack.c.l.b16 %v103
    %v180 = vunpack.c.h.b16 %v103
    %v181 = vunpack.c.l.b16 %v104
    %v182 = vunpack.c.h.b16 %v104
    %v183 = vunpack.c.l.b16 %v105
    %v184 = vunpack.c.h.b16 %v105
    %v185 = vunpack.c.l.b16 %v106
    %v186 = vunpack.c.h.b16 %v106
    %v187 = vunpack.c.l.b16 %v107
    %v188 = vunpack.c.h.b16 %v107
    %v189 = vunpack.c.l.b16 %v108
    %v190 = vunpack.c.h.b16 %v108
    %v191 = vunpack.c.l.b16 %v109
    %v192 = vunpack.c.h.b16 %v109
    %v193 = vunpack.c.l.b16 %v110
    %v194 = vunpack.c.h.b16 %v110
    %v195 = vunpack.c.l.b16 %v111
    %v196 = vunpack.c.h.b16 %v111
    %v197 = vunpack.c.l.b16 %v112
    %v198 = vunpack.c.h.b16 %v112
    %v199 = vunpack.c.l.b16 %v113
    %v200 = vunpack.c.h.b16 %v113
    %v201 = vunpack.c.l.b16 %v114
    %v202 = vunpack.c.h.b16 %v114
    %v203 = vunpack.c.l.b16 %v115
    %v204 = vunpack.c.h.b16 %v115
    %v205 = vunpack.c.l.b16 %v116
    %v206 = vunpack.c.h.b16 %v116
    %v207 = vunpack.c.l.b16 %v117
    %v208 = vunpack.c.h.b16 %v117
    %v209 = vunpack.c.l.b16 %v118
    %v210 = vunpack.c.h.b16 %v118
    %v211 = vunpack.c.l.b16 %v119
    %v212 = vunpack.c.h.b16 %v119
    %v213 = vunpack.c.l.b16 %v120
    %v214 = vunpack.c.h.b16 %v120
    %v215 = vunpack.c.l.b16 %v121
    %v216 = vunpack.c.h.b16 %v121
    %v217 = vunpack.c.l.b16 %v122
    %v218 = vunpack.c.h.b16 %v122
    %v219 = vunpack.c.l.b16 %v123
    %v220 = vunpack.c.h.b16 %v123
    %v221 = vunpack.c.l.b16 %v124
    %v222 = vunpack.c.h.b16 %v124
    %v223 = vunpack.c.l.b16 %v125
    %v224 = vunpack.c.h.b16 %v125
    %v225 = vunpack.c.l.b16 %v126
    %v226 = vunpack.c.h.b16 %v126
    %v227 = vunpack.c.l.b16 %v127
    %v228 = vunpack.c.h.b16 %v127
    %v229 = vunpack.c.l.b16 %v128
    %v230 = vunpack.c.h.b16 %v128
    %v231 = vunpack.c.l.b16 %v129
    %v232 = vunpack.c.h.b16 %v129
    %v233 = vunpack.c.l.b16 %v130
    %v234 = vunpack.c.h.b16 %v130
    %v235 = vunpack.c.l.b16 %v131
    %v236 = vunpack.c.h.b16 %v131
    %v237 = vunpack.c.l.b16 %v132
    %v238 = vunpack.c.h.b16 %v132
    %v239 = vunpack.c.l.b16 %v133
    %v240 = vunpack.c.h.b16 %v133
    %v241 = vunpack.c.l.b16 %v134
    %v242 = vunpack.c.h.b16 %v134
    %v243 = vpack.c.b16 %v181, %v179
    %v244 = vpack.c.b16 %v182, %v180
    %v245 = vpack.c.b16 %v185, %v183
    %v246 = vpack.c.b16 %v186, %v184
    %v247 = vpack.c.b16 %v189, %v187
    %v248 = vpack.c.b16 %v190, %v188
    %v249 = vpack.c.b16 %v193, %v191
    %v250 = vpack.c.b16 %v194, %v192
    %v251 = vpack.c.b16 %v197, %v195
    %v252 = vpack.c.b16 %v198, %v196
    %v253 = vpack.c.b16 %v201, %v199
    %v254 = vpack.c.b16 %v202, %v200
    %v255 = vpack.c.b16 %v205, %v203
    %v256 = vpack.c.b16 %v206, %v204
    %v257 = vpack.c.b16 %v209, %v207
    %v258 = vpack.c.b16 %v210, %v208
    %v259 = vpack.c.b16 %v213, %v211
    %v260 = vpack.c.b16 %v214, %v212
    %v261 = vpack.c.b16 %v217, %v215
    %v262 = vpack.c.b16 %v218, %v216
    %v263 = vpack.c.b16 %v221, %v219
    %v264 = vpack.c.b16 %v222, %v220
    %v265 = vpack.c.b16 %v225, %v223
    %v266 = vpack.c.b16 %v226, %v224
    %v267 = vpack.c.b16 %v229, %v227
    %v268 = vpack.c.b16 %v230, %v228
    %v269 = vpack.c.b16 %v233, %v231
    %v270 = vpack.c.b16 %v234, %v232
    %v271 = vpack.c.b16 %v237, %v235
    %v272 = vpack.c.b16 %v238, %v236
    %v273 = vpack.c.b16 %v241, %v239
    %v274 = vpack.c.b16 %v242, %v240
    %307 = vmatprep.subr.bf16.mxu0 %v244
    %308 = vmatpush1.bf16.msra.mxu0 %v243
    %309 = vmatprep.subr.bf16.mxu0 %v246
    %310 = vmatpush1.bf16.msra.mxu0 %v245
    %311 = vmatprep.subr.bf16.mxu0 %v248
    %312 = vmatpush1.bf16.msra.mxu0 %v247
    %313 = vmatprep.subr.bf16.mxu0 %v250
    %314 = vmatpush1.bf16.msra.mxu0 %v249
    %315 = vmatprep.subr.bf16.mxu0 %v252
    %316 = vmatpush1.bf16.msra.mxu0 %v251
    %317 = vmatprep.subr.bf16.mxu0 %v254
    %318 = vmatpush1.bf16.msra.mxu0 %v253
    %319 = vmatprep.subr.bf16.mxu0 %v256
    %320 = vmatpush1.bf16.msra.mxu0 %v255
    %321 = vmatprep.subr.bf16.mxu0 %v258
    %322 = vmatpush1.bf16.msra.mxu0 %v257
    %323 = vmatprep.subr.bf16.mxu0 %v260
    %324 = vmatpush1.bf16.msra.mxu0 %v259
    %325 = vmatprep.subr.bf16.mxu0 %v262
    %326 = vmatpush1.bf16.msra.mxu0 %v261
    %327 = vmatprep.subr.bf16.mxu0 %v264
    %328 = vmatpush1.bf16.msra.mxu0 %v263
    %329 = vmatprep.subr.bf16.mxu0 %v266
    %330 = vmatpush1.bf16.msra.mxu0 %v265
    %331 = vmatprep.subr.bf16.mxu0 %v268
    %332 = vmatpush1.bf16.msra.mxu0 %v267
    %333 = vmatprep.subr.bf16.mxu0 %v270
    %334 = vmatpush1.bf16.msra.mxu0 %v269
    %335 = vmatprep.subr.bf16.mxu0 %v272
    %336 = vmatpush1.bf16.msra.mxu0 %v271
    %337 = vmatprep.subr.bf16.mxu0 %v274
    %338 = vmatpush1.bf16.msra.mxu0 %v273
    %339 = vmatprep.mubr.bf16.mxu0 %v102
    %340 = vmatmul.mubr.bf16.gmra.mrb[0].mxu0 %v101
    %v341 = vpop.f32.mrb[0].mxu0
    %v342 = vadd.f32 %v140, %v341
    %v343 = vpop.f32.mrb[0].mxu0
    %v344 = vadd.f32 %v144, %v343
    %v345 = vpop.f32.mrb[0].mxu0
    %v346 = vpop.f32.mrb[0].mxu0
    %347 = vdwg.mxu0
    %v348 = vmax.f32 %v342, 0.0
    %v349 = vmax.f32 %v344, 0.0
    %v350 = vpack.c.bf16 %v348, %v348
    %v351 = vpack.c.bf16 %v349, %v349
    %v352 = vld [vmem:[%s5] sm:$0xf]
    %v353 = vld [vmem:[%s5 + $0x4] sm:$0xf]
    %v354 = vld [vmem:[%s5 + $0x8] sm:$0xf]
    %v355 = vld [vmem:[%s5 + $0xc] sm:$0xf]
    %v356 = vld [vmem:[%s5 + $0x10] sm:$0xf]
    %v357 = vld [vmem:[%s5 + $0x14] sm:$0xf]
    %v358 = vld [vmem:[%s5 + $0x18] sm:$0xf]
    %v359 = vld [vmem:[%s5 + $0x1c] sm:$0xf]
    %v360 = vld [vmem:[%s5 + $0x20] sm:$0xf]
    %v361 = vld [vmem:[%s5 + $0x24] sm:$0xf]
    %v362 = vld [vmem:[%s5 + $0x28] sm:$0xf]
    %v363 = vld [vmem:[%s5 + $0x2c] sm:$0xf]
    %v364 = vld [vmem:[%s5 + $0x30] sm:$0xf]
    %v365 = vld [vmem:[%s5 + $0x34] sm:$0xf]
    %v366 = vld [vmem:[%s5 + $0x38] sm:$0xf]
    %v367 = vld [vmem:[%s5 + $0x3c] sm:$0xf]
    %v368 = vld [vmem:[%s5 + $0x40] sm:$0xf]
    %v369 = vld [vmem:[%s5 + $0x44] sm:$0xf]
    %v370 = vld [vmem:[%s5 + $0x48] sm:$0xf]
    %v371 = vld [vmem:[%s5 + $0x4c] sm:$0xf]
    %v372 = vld [vmem:[%s5 + $0x50] sm:$0xf]
    %v373 = vld [vmem:[%s5 + $0x54] sm:$0xf]
    %v374 = vld [vmem:[%s5 + $0x58] sm:$0xf]
    %v375 = vld [vmem:[%s5 + $0x5c] sm:$0xf]
    %v376 = vld [vmem:[%s5 + $0x60] sm:$0xf]
    %v377 = vld [vmem:[%s5 + $0x64] sm:$0xf]
    %v378 = vld [vmem:[%s5 + $0x68] sm:$0xf]
    %v379 = vld [vmem:[%s5 + $0x6c] sm:$0xf]
    %v380 = vld [vmem:[%s5 + $0x70] sm:$0xf]
    %v381 = vld [vmem:[%s5 + $0x74] sm:$0xf]
    %v382 = vld [vmem:[%s5 + $0x78] sm:$0xf]
    %v383 = vld [vmem:[%s5 + $0x7c] sm:$0xf]
    %v384 = vld [vmem:[%s6] sm:$0x1]
    %v386 = vlaneseq
    %v387 = vshrl.u32 %v386, 7
    %v388 = vsub.s32 0, %v387
    %v389 = vrot.slane %v384, %v388
    %v423 = vunpack.c.l.b16 %v352
    %v424 = vunpack.c.l.b16 %v353
    %v425 = vunpack.c.l.b16 %v354
    %v426 = vunpack.c.l.b16 %v355
    %v427 = vunpack.c.l.b16 %v356
    %v428 = vunpack.c.l.b16 %v357
    %v429 = vunpack.c.l.b16 %v358
    %v430 = vunpack.c.l.b16 %v359
    %v431 = vunpack.c.l.b16 %v360
    %v432 = vunpack.c.l.b16 %v361
    %v433 = vunpack.c.l.b16 %v362
    %v434 = vunpack.c.l.b16 %v363
    %v435 = vunpack.c.l.b16 %v364
    %v436 = vunpack.c.l.b16 %v365
    %v437 = vunpack.c.l.b16 %v366
    %v438 = vunpack.c.l.b16 %v367
    %v439 = vunpack.c.l.b16 %v368
    %v440 = vunpack.c.l.b16 %v369
    %v441 = vunpack.c.l.b16 %v370
    %v442 = vunpack.c.l.b16 %v371
    %v443 = vunpack.c.l.b16 %v372
    %v444 = vunpack.c.l.b16 %v373
    %v445 = vunpack.c.l.b16 %v374
    %v446 = vunpack.c.l.b16 %v375
    %v447 = vunpack.c.l.b16 %v376
    %v448 = vunpack.c.l.b16 %v377
    %v449 = vunpack.c.l.b16 %v378
    %v450 = vunpack.c.l.b16 %v379
    %v451 = vunpack.c.l.b16 %v380
    %v452 = vunpack.c.l.b16 %v381
    %v453 = vunpack.c.l.b16 %v382
    %v454 = vunpack.c.l.b16 %v383
    %v455 = vpack.c.b16 %v424, %v423
    %v456 = vpack.c.b16 %v426, %v425
    %v457 = vpack.c.b16 %v428, %v427
    %v458 = vpack.c.b16 %v430, %v429
    %v459 = vpack.c.b16 %v432, %v431
    %v460 = vpack.c.b16 %v434, %v433
    %v461 = vpack.c.b16 %v436, %v435
    %v462 = vpack.c.b16 %v438, %v437
    %v463 = vpack.c.b16 %v440, %v439
    %v464 = vpack.c.b16 %v442, %v441
    %v465 = vpack.c.b16 %v444, %v443
    %v466 = vpack.c.b16 %v446, %v445
    %v467 = vpack.c.b16 %v448, %v447
    %v468 = vpack.c.b16 %v450, %v449
    %v469 = vpack.c.b16 %v452, %v451
    %v470 = vpack.c.b16 %v454, %v453
    %487 = vmatprep.subr.bf16.mxu0 0
    %488 = vmatpush1.bf16.msra.mxu0 %v455
    %489 = vmatprep.subr.bf16.mxu0 0
    %490 = vmatpush1.bf16.msra.mxu0 %v456
    %491 = vmatprep.subr.bf16.mxu0 0
    %492 = vmatpush1.bf16.msra.mxu0 %v457
    %493 = vmatprep.subr.bf16.mxu0 0
    %494 = vmatpush1.bf16.msra.mxu0 %v458
    %495 = vmatprep.subr.bf16.mxu0 0
    %496 = vmatpush1.bf16.msra.mxu0 %v459
    %497 = vmatprep.subr.bf16.mxu0 0
    %498 = vmatpush1.bf16.msra.mxu0 %v460
    %499 = vmatprep.subr.bf16.mxu0 0
    %500 = vmatpush1.bf16.msra.mxu0 %v461
    %501 = vmatprep.subr.bf16.mxu0 0
    %502 = vmatpush1.bf16.msra.mxu0 %v462
    %503 = vmatprep.subr.bf16.mxu0 0
    %504 = vmatpush1.bf16.msra.mxu0 %v463
    %505 = vmatprep.subr.bf16.mxu0 0
    %506 = vmatpush1.bf16.msra.mxu0 %v464
    %507 = vmatprep.subr.bf16.mxu0 0
    %508 = vmatpush1.bf16.msra.mxu0 %v465
    %509 = vmatprep.subr.bf16.mxu0 0
    %510 = vmatpush1.bf16.msra.mxu0 %v466
    %511 = vmatprep.subr.bf16.mxu0 0
    %512 = vmatpush1.bf16.msra.mxu0 %v467
    %513 = vmatprep.subr.bf16.mxu0 0
    %514 = vmatpush1.bf16.msra.mxu0 %v468
    %515 = vmatprep.subr.bf16.mxu0 0
    %516 = vmatpush1.bf16.msra.mxu0 %v469
    %517 = vmatprep.subr.bf16.mxu0 0
    %518 = vmatpush1.bf16.msra.mxu0 %v470
    %519 = vmatprep.mubr.bf16.mxu0 %v351
    %520 = vmatmul.mubr.bf16.gmra.mrb[0].mxu0 %v350
    %v521 = vpop.f32.mrb[0].mxu0
    %v522 = vadd.f32 %v389, %v521
    %v523 = vpop.f32.mrb[0].mxu0
    %v524 = vpop.f32.mrb[0].mxu0
    %v525 = vpop.f32.mrb[0].mxu0
    %526 = vdwg.mxu0
    %v527 = vtanh.pop %v522
    %528 = vst [vmem:[#allocation2] sm:$0xff] %v527
    // Predicated region
    $region30: #{actor_forward.1} parent=1 // pred_check
      _
    $region31: #{actor_forward.1} parent=1 // pred_check_branch
      %530 = sbr.rel (0) target = $region33
    $region32: #{actor_forward.1} parent=1 // pred_region
      %s532 = ssub.s32 128, 128
      %533 = vsyncadd [#allocation3], %s532
      %s535 = sshll.u32 [#allocation2], 4
      %s536 = int_to_ptr.vmem [resolvable:$true] %s535
      %538 = dma.vmem_to_hbm [thread:$0]  %s536, 128, %s7, [#allocation3]
    $region33: #{actor_forward.1} parent=1 // pred_fallthru
      _
    // Predicated region
    $region34: #{actor_forward.1} parent=1 // pred_check
      _
    $region35: #{actor_forward.1} parent=1 // pred_check_branch
      %540 = sbr.rel (0) target = $region37
    $region36: #{actor_forward.1} parent=1 // pred_region
      %541 = dma.done [#allocation3], 128
    $region37: #{actor_forward.1} parent=1 // pred_fallthru
      _
    %542 = vsyncpa [#allocation3], 1

</llo_original>
